<compile_context>
chip_gen: v7x
topology: tpu7x:2x2x1
jax: 0.10.0
libtpu: 0.0.40
codegen_flags: <defaults>
</compile_context>

<pallas_src>
import math

import jax
import jax.numpy as jnp
from jax import lax
from jax.experimental import pallas as pl
from jax.experimental.pallas import tpu as pltpu

KH = KW = 4     # kernel_size = 4
STRIDE = 2      # stride = 2
PAD = 1         # padding = 1, padding_mode = 'reflect'


def _make_cnn_block_kernel(k_half, fuse_single):
    """k_half = 8*C = weight rows per column-half of the 4x4 window."""

    def kernel(x_ref, w_ref, o_ref):
        # x_ref: (1, TOH, Ws, 8C) bf16 — space-to-depth rows, top/bottom window
        #        halves pre-packed along channels.
        # w_ref: (16C, OC_pad)   bf16 — resident, single-buffered.
        # o_ref: (1, TOH, OW, OC_pad)
        ow = o_ref.shape[2]
        x = x_ref[...]
        if fuse_single:
            # Large-C path: one fused MXU contraction (K = 16*C >= 512).
            patch = jnp.concatenate([x[:, :, :ow, :], x[:, :, 1:, :]], axis=-1)
            acc = lax.dot_general(
                patch, w_ref[...],
                dimension_numbers=(((3,), (0,)), ((), ())),
                preferred_element_type=jnp.float32)
        else:
            # Small/medium-C path: split the weight slab — avoids materializing
            # the (TOH, OW, 16C) lane-concat copy in VMEM.
            acc = lax.dot_general(
                x[:, :, :ow, :], w_ref[:k_half, :],
                dimension_numbers=(((3,), (0,)), ((), ())),
                preferred_element_type=jnp.float32)
            acc = acc + lax.dot_general(
                x[:, :, 1:, :], w_ref[k_half:, :],
                dimension_numbers=(((3,), (0,)), ((), ())),
                preferred_element_type=jnp.float32)
        o_ref[...] = acc.astype(o_ref.dtype)

    return kernel


def _vmem_budgets():
    """Generation-aware (strip budget, scoped-vmem cap)."""
    try:
        cap = int(pltpu.get_tpu_info().vmem_capacity_bytes)
    except Exception:
        cap = 64 << 20
    if cap >= (100 << 20):          # v5e / v6e: 128 MiB per TensorCore
        return 28 << 20, 96 << 20
    return 10 << 20, 48 << 20       # v7x: 64 MiB per TensorCore — keep headroom


def _pick_strip_rows(oh, ow, ws, in_ch, oc_pad, in_item, out_item, budget_bytes):
    """Largest output-row strip whose double-buffered in/out blocks fit the budget,
    keeping >= 2 strips (pipeline overlap + v7x core split when N == 1) and a soft
    preference for M = TOH*OW being a multiple of 256 (MXU fill on v6e/v7x).
    OH need not divide evenly — the wrapper zero-pads rows up to a TOH multiple."""
    def blk_bytes(toh):
        return 2 * (toh * ws * in_ch * in_item + toh * ow * oc_pad * out_item)

    toh = oh
    while toh > 1 and blk_bytes(toh) > budget_bytes:
        toh -= 1
    if oh >= 2:
        toh = min(toh, (oh + 1) // 2)
    if toh * ow >= 256:
        step = 256 // math.gcd(ow, 256)
        if toh >= step:
            toh = (toh // step) * step
    return max(toh, 1)


def spectral_normalize(w, key, n_power_iterations=1, eps=1e-12):
    """Mimics torch.nn.utils.spectral_norm (training-mode forward): one power
    iteration, sigma = u^T W v, weight / sigma.
    # TODO(synk): torch keeps u/v as persistent buffers updated across forwards;
    # here u is re-initialized deterministically each call (stateless)."""
    oc = w.shape[0]
    w_mat = w.reshape(oc, -1)
    u = jax.random.normal(key, (oc,), dtype=w.dtype)
    u = u / (jnp.linalg.norm(u) + eps)
    v = jnp.zeros((w_mat.shape[1],), dtype=w.dtype)
    for _ in range(n_power_iterations):
        v = w_mat.T @ u
        v = v / (jnp.linalg.norm(v) + eps)
        u = w_mat @ v
        u = u / (jnp.linalg.norm(u) + eps)
    sigma = u @ (w_mat @ v)
    return w / sigma


def cnn_block_forward(x_nchw, w_sn):
    """x_nchw: (N, C, H, W); w_sn: (OC, C, 4, 4) -> (N, OC, H//2, W//2)."""
    N, C, H, W = x_nchw.shape
    OC = w_sn.shape[0]
    assert H % 2 == 0 and W % 2 == 0 and H >= 2 and W >= 2, \
        "CNNBlock kernel expects even H, W >= 2 (reflect padding)"
    OH, OW = H // 2, W // 2                    # (H + 2*PAD - KH)//STRIDE + 1
    Hs, Ws = OH + 1, OW + 1                    # space-to-depth grid of padded input
    C4 = 4 * C                                 # channels per 2x2 padded cell
    C8 = 2 * C4                                # channels per column-half of window
    K = 2 * C8                                 # = KH*KW*C, full contraction dim
    out_dtype = x_nchw.dtype

    # Shape-dependent output lane padding: lane-dense stores when cheap, unpadded
    # masked stores for tiny OC (avoids 128/OC x write amplification).
    if OC % 128 == 0:
        OC_pad = OC
    elif OC > 128:
        OC_pad = ((OC + 127) // 128) * 128
    else:
        OC_pad = OC

    # ---- layout glue (cast to bf16 first: halves every wrapper HBM pass) ----
    x_bf = x_nchw.astype(jnp.bfloat16)
    x_nhwc = jnp.transpose(x_bf, (0, 2, 3, 1))
    x_pad = jnp.pad(x_nhwc, ((0, 0), (PAD, PAD), (PAD, PAD), (0, 0)),
                    mode="reflect")                            # (N, H+2, W+2, C)
    # space-to-depth factor 2: cell (r, s) channel (dr, dc, c) = x_pad[2r+dr, 2s+dc, c]
    x_s2d = (x_pad.reshape(N, Hs, 2, Ws, 2, C)
                  .transpose(0, 1, 3, 2, 4, 5)
                  .reshape(N, Hs, Ws, C4))
    # pre-pack "row oh" and "row oh+1" halves along channels -> halo-free row strips
    # TODO(synk): this duplicates interior s2d rows (~2x input read); a manual
    # halo-strip DMA (memory_space=pl.ANY + make_async_copy) would halve it.
    x_cat = jnp.concatenate([x_s2d[:, :OH], x_s2d[:, 1:]], axis=-1)  # (N, OH, Ws, 8C)

    # weights: (OC, C, KH, KW) -> 2-D slab whose row order matches the patch
    # channel order (bc, br, dr, dc, c), with kh = 2*br + dr, kw = 2*bc + dc.
    w_hwio = jnp.transpose(w_sn, (2, 3, 1, 0))                 # (KH, KW, C, OC)
    w2d = (w_hwio.reshape(2, 2, 2, 2, C, OC)                   # (br, dr, bc, dc, C, OC)
                 .transpose(2, 0, 1, 3, 4, 5)                  # (bc, br, dr, dc, C, OC)
                 .reshape(K, OC))
    if OC_pad != OC:
        w2d = jnp.pad(w2d, ((0, 0), (0, OC_pad - OC)))
    w2d = w2d.astype(jnp.bfloat16)                             # (K, OC_pad) bf16

    in_item = jnp.dtype(jnp.bfloat16).itemsize
    out_item = jnp.dtype(out_dtype).itemsize
    strip_budget, vmem_cap = _vmem_budgets()
    TOH = _pick_strip_rows(OH, OW, Ws, C8, OC_pad, in_item, out_item, strip_budget)
    n_strips = pl.cdiv(OH, TOH)
    OH_pad = n_strips * TOH
    if OH_pad != OH:                                           # pad awkward OH
        x_cat = jnp.pad(x_cat, ((0, 0), (0, OH_pad - OH), (0, 0), (0, 0)))

    x_blk = TOH * Ws * C8 * in_item
    o_blk = TOH * OW * OC_pad * out_item
    w_blk = K * OC_pad * in_item                               # single-buffered
    vmem_limit = int(min(max(2 * (x_blk + o_blk) + w_blk + (6 << 20), 24 << 20),
                         vmem_cap))

    kernel = _make_cnn_block_kernel(C8, fuse_single=(C8 >= 256))

    out_padded = pl.pallas_call(
        kernel,
        out_shape=jax.ShapeDtypeStruct((N, OH_pad, OW, OC_pad), out_dtype),
        grid_spec=pltpu.PrefetchScalarGridSpec(
            num_scalar_prefetch=0,
            grid=(N, n_strips),
            in_specs=[
                pl.BlockSpec((1, TOH, Ws, C8), lambda n, s: (n, s, 0, 0)),
                # constant index map -> weights stay resident; single buffer.
                pl.BlockSpec((K, OC_pad), lambda n, s: (0, 0),
                             pipeline_mode=pl.Buffered(1)),
            ],
            out_specs=pl.BlockSpec((1, TOH, OW, OC_pad),
                                   lambda n, s: (n, s, 0, 0)),
        ),
        compiler_params=pltpu.CompilerParams(
            dimension_semantics=("parallel", "parallel"),
            vmem_limit_bytes=vmem_limit),
    )(x_cat, w2d)

    out_nhwc = out_padded[:, :OH] if OH_pad != OH else out_padded
    if OC_pad != OC:
        out_nhwc = out_nhwc[..., :OC]                          # strip lane padding
    # TODO(synk): drop this transpose (and keep NHWC) if the consumer allows it.
    return jnp.transpose(out_nhwc, (0, 3, 1, 2))               # back to NCHW


def _reference(x_nchw, w_sn):
    """Pure-JAX reference with the same bf16 operand rounding the kernel uses
    (products exact in f32, f32 accumulation) so the check is tight."""
    x = x_nchw.astype(jnp.bfloat16).astype(jnp.float32)
    w = w_sn.astype(jnp.bfloat16).astype(jnp.float32)
    x_nhwc = jnp.transpose(x, (0, 2, 3, 1))
    x_pad = jnp.pad(x_nhwc, ((0, 0), (PAD, PAD), (PAD, PAD), (0, 0)),
                    mode="reflect")
    w_hwio = jnp.transpose(w, (2, 3, 1, 0))
    out = lax.conv_general_dilated(
        x_pad, w_hwio, window_strides=(STRIDE, STRIDE), padding="VALID",
        dimension_numbers=("NHWC", "HWIO", "NHWC"),
        precision=lax.Precision.HIGHEST)
    return jnp.transpose(out, (0, 3, 1, 2))


if __name__ == "__main__":
    # Small shapes consistent with CNNBlock(in_channels=4, out_channels=8).
    N, C_IN, C_OUT, H, W = 2, 4, 8, 16, 16

    key = jax.random.PRNGKey(0)
    k_x, k_w, k_u = jax.random.split(key, 3)

    x = jax.random.normal(k_x, (N, C_IN, H, W), dtype=jnp.float32)
    # Deterministic synthetic weight_orig (OC, C, KH, KW); no bias (bias=False).
    w_orig = 0.1 * jax.random.normal(k_w, (C_OUT, C_IN, KH, KW),
                                     dtype=jnp.float32)
    w_sn = spectral_normalize(w_orig, k_u, n_power_iterations=1)

    out = jax.jit(cnn_block_forward)(x, w_sn)
    out = jax.block_until_ready(out)

    ref = _reference(x, w_sn)
    assert out.shape == (N, C_OUT, H // 2, W // 2), out.shape
    max_err = float(jnp.max(jnp.abs(out.astype(jnp.float32) - ref)))
    assert jnp.allclose(out.astype(jnp.float32), ref, atol=1e-2, rtol=1e-2), max_err

    print("KERNEL_OK")
</pallas_src>

<mosaic_0001>
module attributes {stable_mosaic.version = 11 : i64} {
  func.func @kernel(%arg0: i32, %arg1: i32, %arg2: memref<1x4x9x32xbf16, #tpu.memory_space<vmem>>, %arg3: memref<64x8xbf16, #tpu.memory_space<vmem>>, %arg4: memref<1x4x8x8xf32, #tpu.memory_space<vmem>>) attributes {dimension_semantics = [#tpu.dimension_semantics<parallel>, #tpu.dimension_semantics<parallel>], iteration_bounds = array<i64: 2, 2>, scalar_prefetch = 0 : i64, scratch_operands = 0 : i64, tpu.core_type = #tpu.core_type<tc>, window_params = [{transform_indices = @transform_0, window_bounds = array<i64: 1, 4, 9, 32>}, {pipeline_mode = #tpu.pipeline_mode<synchronous>, transform_indices = @transform_1, window_bounds = array<i64: 64, 8>}, {transform_indices = @transform_2, window_bounds = array<i64: 1, 4, 8, 8>}]} {
    %c0 = arith.constant 0 : index
    %c0_0 = arith.constant 0 : index
    %c0_1 = arith.constant 0 : index
    %c0_2 = arith.constant 0 : index
    %0 = vector.load %arg2[%c0, %c0_0, %c0_1, %c0_2] : memref<1x4x9x32xbf16, #tpu.memory_space<vmem>>, vector<1x4x9x32xbf16>
    %1 = vector.extract_strided_slice %0 {offsets = [0, 0, 0, 0], sizes = [1, 4, 8, 32], strides = [1, 1, 1, 1]} : vector<1x4x9x32xbf16> to vector<1x4x8x32xbf16>
    %c0_3 = arith.constant 0 : index
    %c0_4 = arith.constant 0 : index
    %2 = vector.load %arg3[%c0_3, %c0_4] : memref<64x8xbf16, #tpu.memory_space<vmem>>, vector<32x8xbf16>
    %cst = arith.constant dense<0.000000e+00> : vector<1x4x8x8xf32>
    %3 = tpu.matmul %1, %2, %cst {dimension_numbers = #tpu.dot_dimension_numbers<[3], [0], [0, 1, 2], [1], [0, 0, 0, 1, 0, 2, 1, 1], [], []>} : vector<1x4x8x32xbf16>, vector<32x8xbf16>, vector<1x4x8x8xf32> -> vector<1x4x8x8xf32>
    %4 = vector.extract_strided_slice %0 {offsets = [0, 0, 1, 0], sizes = [1, 4, 8, 32], strides = [1, 1, 1, 1]} : vector<1x4x9x32xbf16> to vector<1x4x8x32xbf16>
    %c32 = arith.constant 32 : index
    %c0_5 = arith.constant 0 : index
    %5 = vector.load %arg3[%c32, %c0_5] : memref<64x8xbf16, #tpu.memory_space<vmem>>, vector<32x8xbf16>
    %cst_6 = arith.constant dense<0.000000e+00> : vector<1x4x8x8xf32>
    %6 = tpu.matmul %4, %5, %cst_6 {dimension_numbers = #tpu.dot_dimension_numbers<[3], [0], [0, 1, 2], [1], [0, 0, 0, 1, 0, 2, 1, 1], [], []>} : vector<1x4x8x32xbf16>, vector<32x8xbf16>, vector<1x4x8x8xf32> -> vector<1x4x8x8xf32>
    %7 = arith.addf %3, %6 : vector<1x4x8x8xf32>
    %c0_7 = arith.constant 0 : index
    %c0_8 = arith.constant 0 : index
    %c0_9 = arith.constant 0 : index
    %c0_10 = arith.constant 0 : index
    %8 = vector.load %arg4[%c0_7, %c0_8, %c0_9, %c0_10] : memref<1x4x8x8xf32, #tpu.memory_space<vmem>>, vector<1x4x8x8xf32>
    tpu.vector_store %arg4[%c0_7, %c0_8, %c0_9, %c0_10], %7 {strides = array<i32>} : memref<1x4x8x8xf32, #tpu.memory_space<vmem>>, vector<1x4x8x8xf32>,
    return
  }
  func.func @transform_0(%arg0: i32, %arg1: i32) -> (i32, i32, i32, i32) {
    %c0_i32 = arith.constant 0 : i32
    %c0_i32_0 = arith.constant 0 : i32
    %c0_i32_1 = arith.constant 0 : i32
    return %arg0, %arg1, %c0_i32, %c0_i32_0 : i32, i32, i32, i32
  }
  func.func @transform_1(%arg0: i32, %arg1: i32) -> (i32, i32) {
    %c0_i32 = arith.constant 0 : i32
    %c0_i32_0 = arith.constant 0 : i32
    %c0_i32_1 = arith.constant 0 : i32
    return %c0_i32, %c0_i32_0 : i32, i32
  }
  func.func @transform_2(%arg0: i32, %arg1: i32) -> (i32, i32, i32, i32) {
    %c0_i32 = arith.constant 0 : i32
    %c0_i32_0 = arith.constant 0 : i32
    %c0_i32_1 = arith.constant 0 : i32
    return %arg0, %arg1, %c0_i32, %c0_i32_0 : i32, i32, i32, i32
  }
}

</mosaic_0001>

<llo_original>
// kernel: cnn_block_forward.1
$region0: #{cnn_block_forward.1}
  #allocation0 [shape = 'u32[]', space=smem, size = 0x4, offset = 0x4, fixed_abs, tag = 'smem constant byte address 0x4 - core index']
  #allocation1 [shape = 'u32[144,128]{1,0:T(1,128)}', space=vmem, size = 0x12000, scoped, tag = 'internal scratch']
  %s0 = inlined_call_operand.vmem [shape: bf16[2,8,9,32], index: 0, kind: input, shape index: {}]
  %s1 = inlined_call_operand.vmem [shape: bf16[64,8], index: 1, kind: input, shape index: {}]
  %s2 = inlined_call_operand.vmem [shape: f32[2,8,8,8], index: 2, kind: output, shape index: {}]
  %s3 = sld [smem:[#allocation0]]
  $region41: #{cnn_block_forward.1} parent=0
    _
  %s5 = ssub.s32 1, %s3
  %s6 = scalar_select 0, %s5, %s3
  loop: start=0, step=1, limit=6
  $region2: #{cnn_block_forward.1} parent=0 // loop_pre_header
    _
  $region3: #{cnn_block_forward.1} parent=0 // loop_header
    %s8 = sphi 0, %s12
    %p9 = scmp.ge.s32.totalorder %s8, 6
    %s15 = sphi 0, %s27
    %s16 = sphi 0, %s23
    %s17 = sphi 0, %s15
    %s18 = sphi 0, %s16
    %s19 = sphi 0, %s17
    %s20 = sphi 0, %s18
    %s32 = sphi 0, %s34
    %s35 = sphi 0, %s32
    %s36 = sphi 0, %s35
    %s52 = sphi 0, %s36
    %s56 = sphi 0, %s56
    %s58 = sphi 0, %s56
    %s59 = sphi 0, %s58
    %s73 = sphi 0, %s59
    %s81 = sphi 0, %s83
    %s84 = sphi 0, %s81
    %s85 = sphi 0, %s84
    %s101 = sphi 0, %s85
  $region4: #{cnn_block_forward.1} parent=0 // loop_header_branch
    %11 = sbr.rel (%p9) target = $region8
  $region5: #{cnn_block_forward.1} parent=0 // loop_body
    %s13 = ssub.s32 %s8, 1
    %s14 = ssub.s32 %s8, 2
    %s21 = sadd.s32 1, %s16
    %p22 = scmp.ge.s32.totalorder %s21, 2
    %s23 = scalar_select %p22, 0, %s21
    %s24 = sadd.s32 1, %s15
    %s25 = scalar_select %p22, %s24, %s15
    %p26 = scmp.ge.s32.totalorder %s25, 2
    %s27 = scalar_select %p26, 0, %s25
    %s28 = ssub.s32 %s15, %s27
    %s29 = ssub.s32 %s16, %s23
    %s30 = sor.u32 %s28, %s29
    %p31 = scmp.eq.s32.totalorder %s30, 0
    %s33 = sadd.s32 %s32, 1
    %s34 = scalar_select %p31, %s32, %s33
    %p37 = pneg %p31
    %p38 = scmp.eq.s32.totalorder %s8, 3
    %p39 = por %p37, %p38
    %p40 = scmp.ne.s32.totalorder %s32, %s35
    %p41 = scmp.eq.s32.totalorder %s8, 0
    %p42 = por %p40, %p41
    %p43 = scmp.ne.s32.totalorder %s32, %s35
    %p44 = scmp.eq.s32.totalorder %s13, 3
    %p45 = por %p43, %p44
    %p46 = scmp.ne.s32.totalorder %s35, %s36
    %p47 = scmp.eq.s32.totalorder %s13, 0
    %p48 = por %p46, %p47
    %p49 = scmp.ne.s32.totalorder %s35, %s36
    %p50 = scmp.eq.s32.totalorder %s14, 3
    %p51 = por %p49, %p50
    %p53 = scmp.ne.s32.totalorder %s36, %s52
    %p54 = scmp.eq.s32.totalorder %s14, 0
    %p55 = por %p53, %p54
    %s57 = sadd.s32 %s56, 1
    %p60 = scmp.eq.s32.totalorder %s8, 3
    %p61 = scmp.ne.s32.totalorder %s56, %s58
    %p62 = scmp.eq.s32.totalorder %s8, 0
    %p63 = por %p61, %p62
    %p64 = scmp.ne.s32.totalorder %s56, %s58
    %p65 = scmp.eq.s32.totalorder %s13, 3
    %p66 = por %p64, %p65
    %p67 = scmp.ne.s32.totalorder %s58, %s59
    %p68 = scmp.eq.s32.totalorder %s13, 0
    %p69 = por %p67, %p68
    %p70 = scmp.ne.s32.totalorder %s58, %s59
    %p71 = scmp.eq.s32.totalorder %s14, 3
    %p72 = por %p70, %p71
    %p74 = scmp.ne.s32.totalorder %s59, %s73
    %p75 = scmp.eq.s32.totalorder %s14, 0
    %p76 = por %p74, %p75
    %s77 = ssub.s32 %s15, %s27
    %s78 = ssub.s32 %s16, %s23
    %s79 = sor.u32 %s77, %s78
    %p80 = scmp.eq.s32.totalorder %s79, 0
    %s82 = sadd.s32 %s81, 1
    %s83 = scalar_select %p80, %s81, %s82
    %p86 = pneg %p80
    %p87 = scmp.eq.s32.totalorder %s8, 3
    %p88 = por %p86, %p87
    %p89 = scmp.ne.s32.totalorder %s81, %s84
    %p90 = scmp.eq.s32.totalorder %s8, 0
    %p91 = por %p89, %p90
    %p92 = scmp.ne.s32.totalorder %s81, %s84
    %p93 = scmp.eq.s32.totalorder %s13, 3
    %p94 = por %p92, %p93
    %p95 = scmp.ne.s32.totalorder %s84, %s85
    %p96 = scmp.eq.s32.totalorder %s13, 0
    %p97 = por %p95, %p96
    %p98 = scmp.ne.s32.totalorder %s84, %s85
    %p99 = scmp.eq.s32.totalorder %s14, 3
    %p100 = por %p98, %p99
    %p102 = scmp.ne.s32.totalorder %s85, %s101
    %p103 = scmp.eq.s32.totalorder %s14, 0
    %p104 = por %p102, %p103
    %p105 = scmp.le.s32.totalorder 1, %s8
    %p106 = scmp.lt.s32.totalorder %s8, 5
    %p107 = pnand %p105, %p106
    %p108 = pneg %p107
    // Predicated region
    $region9: #{cnn_block_forward.1} parent=5 // pred_check
      _
    $region10: #{cnn_block_forward.1} parent=5 // pred_check_branch
      %110 = sbr.rel (%p107) target = $region12
    $region11: #{cnn_block_forward.1} parent=5 // pred_region
      %s111 = ssub.s32 %s8, 1
      // Predicated region
      $region13: #{cnn_block_forward.1} parent=11 // pred_check
        %p112 = pneg %p69
      $region14: #{cnn_block_forward.1} parent=11 // pred_check_branch
        %114 = sbr.rel (%p112) target = $region16
      $region15: #{cnn_block_forward.1} parent=11 // pred_region
        _
      $region16: #{cnn_block_forward.1} parent=11 // pred_fallthru
        _
    $region12: #{cnn_block_forward.1} parent=5 // pred_fallthru
      _
    %p115 = scmp.lt.s32.totalorder %s8, 4
    // Predicated region
    $region17: #{cnn_block_forward.1} parent=5 // pred_check
      %p116 = pneg %p115
    $region18: #{cnn_block_forward.1} parent=5 // pred_check_branch
      %118 = sbr.rel (%p116) target = $region20
    $region19: #{cnn_block_forward.1} parent=5 // pred_region
      // Predicated region
      $region21: #{cnn_block_forward.1} parent=19 // pred_check
        %p119 = pneg %p42
      $region22: #{cnn_block_forward.1} parent=19 // pred_check_branch
        %121 = sbr.rel (%p119) target = $region24
      $region23: #{cnn_block_forward.1} parent=19 // pred_region
        %s122 = smul.u32 4, %s16
        %p123 = scmp.lt.s32.totalorder %s15, 1
        %s124 = scalar_select %p123, %s15, 1
        %p125 = scmp.lt.s32.totalorder %s122, 7
        %s126 = scalar_select %p125, %s122, 7
        %s127 = smul.addr %s126, 2
        %s128 = smul.addr %s124, 16
        %s129 = sadd.s32 %s127, %s128
        %s130 = smul.addr %s129, 4
        %s131 = scalar_lea.vmem %s0, %s130
        %s132 = smul.u32 4, %s16
      $region24: #{cnn_block_forward.1} parent=19 // pred_fallthru
        _
    $region20: #{cnn_block_forward.1} parent=5 // pred_fallthru
      _
    %p133 = scmp.le.s32.totalorder 1, %s8
    %p134 = scmp.lt.s32.totalorder %s8, 5
    %p135 = pnand %p133, %p134
    %p136 = pneg %p135
    // Predicated region
    $region25: #{cnn_block_forward.1} parent=5 // pred_check
      _
    $region26: #{cnn_block_forward.1} parent=5 // pred_check_branch
      %138 = sbr.rel (%p135) target = $region28
    $region27: #{cnn_block_forward.1} parent=5 // pred_region
      %s139 = ssub.s32 %s8, 1
      %s140 = smul.u32 4, %s18
      %p141 = scmp.lt.s32.totalorder %s17, 1
      %s142 = scalar_select %p141, %s17, 1
      %p143 = scmp.lt.s32.totalorder %s140, 7
      %s144 = scalar_select %p143, %s140, 7
      %s145 = smul.addr %s144, 2
      %s146 = smul.addr %s142, 16
      %s147 = sadd.s32 %s145, %s146
      %s148 = smul.addr %s147, 4
      %s149 = scalar_lea.vmem %s0, %s148
      %p150 = pneg %p48
      %p151 = pneg %p45
      %p152 = pneg %p69
      %p153 = pneg %p66
      %p154 = pneg %p97
      %p155 = pneg %p94
      %s156 = smul.u32 4, %s18
      %p157 = scmp.lt.s32.totalorder %s17, 1
      %s158 = scalar_select %p157, %s17, 1
      %p159 = scmp.lt.s32.totalorder %s156, 7
      %s160 = scalar_select %p159, %s156, 7
      %s161 = smul.addr %s158, 8
      %s162 = sadd.s32 %s160, %s161
      %s163 = smul.addr %s162, 8
      %s164 = scalar_lea.vmem %s2, %s163
      %s165 = smul.u32 4, %s18
      %p166 = scmp.lt.s32.totalorder %s17, 1
      %s167 = scalar_select %p166, %s17, 1
      %p168 = scmp.lt.s32.totalorder %s165, 7
      %s169 = scalar_select %p168, %s165, 7
      %s170 = smul.addr %s169, 2
      %s171 = smul.addr %s167, 16
      %s172 = sadd.s32 %s170, %s171
      %s173 = smul.addr %s172, 4
      %s174 = scalar_lea.vmem %s0, %s173
      %s175 = smul.u32 4, %s18
      %s176 = smul.u32 4, %s18
      %p177 = scmp.lt.s32.totalorder %s17, 1
      %s178 = scalar_select %p177, %s17, 1
      %p179 = scmp.lt.s32.totalorder %s176, 7
      %s180 = scalar_select %p179, %s176, 7
      %s181 = smul.addr %s178, 8
      %s182 = sadd.s32 %s180, %s181
      %s183 = smul.addr %s182, 8
      %s184 = scalar_lea.vmem %s2, %s183
      %s185 = smul.u32 4, %s18
      %v187 = vld [vmem:[%s174] sm:$0xf]
      %v188 = vld [vmem:[%s174 + $0x4] sm:$0x1]
      %v189 = vld [vmem:[%s174 + $0x8] sm:$0xf]
      %v190 = vld [vmem:[%s174 + $0xc] sm:$0x1]
      %v191 = vld [vmem:[%s174 + $0x10] sm:$0xf]
      %v192 = vld [vmem:[%s174 + $0x14] sm:$0x1]
      %v193 = vld [vmem:[%s174 + $0x18] sm:$0xf]
      %v194 = vld [vmem:[%s174 + $0x1c] sm:$0x1]
      %v195 = vld [vmem:[%s1] sm:$0xf]
      %v196 = vld [vmem:[%s1 + $0x4] sm:$0xf]
      %v197 = vld [vmem:[%s1 + $0x8] sm:$0xf]
      %v198 = vld [vmem:[%s1 + $0xc] sm:$0xf]
      %v199 = vld [vmem:[%s1 + $0x10] sm:$0xf]
      %v200 = vld [vmem:[%s1 + $0x14] sm:$0xf]
      %v201 = vld [vmem:[%s1 + $0x18] sm:$0xf]
      %v202 = vld [vmem:[%s1 + $0x1c] sm:$0xf]
      %vm203 = vsmask.f32 3328
      %vm204 = vsmask.f32 7440
      %vm205 = vmor %vm203, %vm204
      %v207 = vshrl.u32 %v187, 16
      %v209 = vrot.slane %v207, 4
      %v210 = vshll.u32 %v187, 16
      %v212 = vrot.slane %v210, 5
      %v213 = vor.u32 %v209, %v212
      %v214 = vrot.slane %v213, 4
      %v216 = vshll.u32 %v188, 16
      %v218 = vrot.slane %v216, 5
      %v219 = vsel %vm205, %v214, %v218
      %v221 = vshrl.u32 %v189, 16
      %v223 = vrot.slane %v221, 4
      %v224 = vshll.u32 %v189, 16
      %v226 = vrot.slane %v224, 5
      %v227 = vor.u32 %v223, %v226
      %v228 = vrot.slane %v227, 4
      %v230 = vshll.u32 %v190, 16
      %v232 = vrot.slane %v230, 5
      %v233 = vsel %vm205, %v228, %v232
      %v235 = vshrl.u32 %v191, 16
      %v237 = vrot.slane %v235, 4
      %v238 = vshll.u32 %v191, 16
      %v240 = vrot.slane %v238, 5
      %v241 = vor.u32 %v237, %v240
      %v242 = vrot.slane %v241, 4
      %v244 = vshll.u32 %v192, 16
      %v246 = vrot.slane %v244, 5
      %v247 = vsel %vm205, %v242, %v246
      %v249 = vshrl.u32 %v193, 16
      %v251 = vrot.slane %v249, 4
      %v252 = vshll.u32 %v193, 16
      %v254 = vrot.slane %v252, 5
      %v255 = vor.u32 %v251, %v254
      %v256 = vrot.slane %v255, 4
      %v258 = vshll.u32 %v194, 16
      %v260 = vrot.slane %v258, 5
      %v261 = vsel %vm205, %v256, %v260
      %v262 = vunpack.c.l.b16 %v219
      %v263 = vunpack.c.l.b16 %v233
      %v264 = vunpack.c.l.b16 %v247
      %v265 = vunpack.c.l.b16 %v261
      %v266 = vpack.c.b16 %v263, %v262
      %v267 = vpack.c.b16 %v265, %v264
      %v272 = vunpack.c.l.b16 %v199
      %v273 = vunpack.c.l.b16 %v200
      %v274 = vunpack.c.l.b16 %v201
      %v275 = vunpack.c.l.b16 %v202
      %v276 = vpack.c.b16 %v273, %v272
      %v277 = vpack.c.b16 %v275, %v274
      %vm280 = vcmask 261120
      %v282 = vsel %vm280, %v266, 0
      %v285 = vsel %vm280, %v267, 0
      %287 = vmatprep.subr.bf16.mxu0 0
      %288 = vmatpush1.bf16.msra.mxu0 %v276
      %289 = vmatprep.subr.bf16.mxu0 0
      %290 = vmatpush1.bf16.msra.mxu0 %v277
      %291 = vmatprep.subr.bf16.mxu0 0
      %292 = vmatpush1.bf16.msra.mxu0 0
      %293 = vmatprep.subr.bf16.mxu0 0
      %294 = vmatpush1.bf16.msra.mxu0 0
      %295 = vmatprep.subr.bf16.mxu0 0
      %296 = vmatpush1.bf16.msra.mxu0 0
      %297 = vmatprep.subr.bf16.mxu0 0
      %298 = vmatpush1.bf16.msra.mxu0 0
      %299 = vmatprep.subr.bf16.mxu0 0
      %300 = vmatpush1.bf16.msra.mxu0 0
      %301 = vmatprep.subr.bf16.mxu0 0
      %302 = vmatpush1.bf16.msra.mxu0 0
      %303 = vmatprep.subr.bf16.mxu0 0
      %304 = vmatpush1.bf16.msra.mxu0 0
      %305 = vmatprep.subr.bf16.mxu0 0
      %306 = vmatpush1.bf16.msra.mxu0 0
      %307 = vmatprep.subr.bf16.mxu0 0
      %308 = vmatpush1.bf16.msra.mxu0 0
      %309 = vmatprep.subr.bf16.mxu0 0
      %310 = vmatpush1.bf16.msra.mxu0 0
      %311 = vmatprep.subr.bf16.mxu0 0
      %312 = vmatpush1.bf16.msra.mxu0 0
      %313 = vmatprep.subr.bf16.mxu0 0
      %314 = vmatpush1.bf16.msra.mxu0 0
      %315 = vmatprep.subr.bf16.mxu0 0
      %316 = vmatpush1.bf16.msra.mxu0 0
      %317 = vmatprep.subr.bf16.mxu0 0
      %318 = vmatpush1.bf16.msra.mxu0 0
      %319 = vmatprep.mubr.bf16.mxu0 0
      %320 = vmatmul.mubr.bf16.gmra.mrb[0].mxu0 %v282
      %v321 = vpop.f32.mrb[0].mxu0
      %v322 = vadd.f32 0.0, %v321
      %v323 = vpop.f32.mrb[0].mxu0
      %v324 = vpop.f32.mrb[0].mxu0
      %v325 = vadd.f32 0.0, %v324
      %v326 = vpop.f32.mrb[0].mxu0
      %327 = vmatprep.mubr.bf16.mxu0 0
      %328 = vmatmul.mubr.bf16.gmra.mrb[0].mxu0 %v285
      %v329 = vpop.f32.mrb[0].mxu0
      %v330 = vadd.f32 0.0, %v329
      %v331 = vpop.f32.mrb[0].mxu0
      %v332 = vpop.f32.mrb[0].mxu0
      %v333 = vadd.f32 0.0, %v332
      %v334 = vpop.f32.mrb[0].mxu0
      %335 = vdwg.mxu0
      %v340 = vunpack.c.l.b16 %v187
      %v341 = vunpack.c.l.b16 %v189
      %v342 = vunpack.c.l.b16 %v191
      %v343 = vunpack.c.l.b16 %v193
      %v344 = vpack.c.b16 %v341, %v340
      %v345 = vpack.c.b16 %v343, %v342
      %v350 = vunpack.c.l.b16 %v195
      %v351 = vunpack.c.l.b16 %v196
      %v352 = vunpack.c.l.b16 %v197
      %v353 = vunpack.c.l.b16 %v198
      %v354 = vpack.c.b16 %v351, %v350
      %v355 = vpack.c.b16 %v353, %v352
      %v359 = vsel %vm280, %v344, 0
      %v362 = vsel %vm280, %v345, 0
      %364 = vmatprep.subr.bf16.mxu0 0
      %365 = vmatpush1.bf16.msra.mxu0 %v354
      %366 = vmatprep.subr.bf16.mxu0 0
      %367 = vmatpush1.bf16.msra.mxu0 %v355
      %368 = vmatprep.subr.bf16.mxu0 0
      %369 = vmatpush1.bf16.msra.mxu0 0
      %370 = vmatprep.subr.bf16.mxu0 0
      %371 = vmatpush1.bf16.msra.mxu0 0
      %372 = vmatprep.subr.bf16.mxu0 0
      %373 = vmatpush1.bf16.msra.mxu0 0
      %374 = vmatprep.subr.bf16.mxu0 0
      %375 = vmatpush1.bf16.msra.mxu0 0
      %376 = vmatprep.subr.bf16.mxu0 0
      %377 = vmatpush1.bf16.msra.mxu0 0
      %378 = vmatprep.subr.bf16.mxu0 0
      %379 = vmatpush1.bf16.msra.mxu0 0
      %380 = vmatprep.subr.bf16.mxu0 0
      %381 = vmatpush1.bf16.msra.mxu0 0
      %382 = vmatprep.subr.bf16.mxu0 0
      %383 = vmatpush1.bf16.msra.mxu0 0
      %384 = vmatprep.subr.bf16.mxu0 0
      %385 = vmatpush1.bf16.msra.mxu0 0
      %386 = vmatprep.subr.bf16.mxu0 0
      %387 = vmatpush1.bf16.msra.mxu0 0
      %388 = vmatprep.subr.bf16.mxu0 0
      %389 = vmatpush1.bf16.msra.mxu0 0
      %390 = vmatprep.subr.bf16.mxu0 0
      %391 = vmatpush1.bf16.msra.mxu0 0
      %392 = vmatprep.subr.bf16.mxu0 0
      %393 = vmatpush1.bf16.msra.mxu0 0
      %394 = vmatprep.subr.bf16.mxu0 0
      %395 = vmatpush1.bf16.msra.mxu0 0
      %396 = vmatprep.mubr.bf16.mxu0 0
      %397 = vmatmul.mubr.bf16.gmra.mrb[0].mxu0 %v359
      %v398 = vpop.f32.mrb[0].mxu0
      %v399 = vadd.f32 %v322, %v398
      %v400 = vpop.f32.mrb[0].mxu0
      %v401 = vpop.f32.mrb[0].mxu0
      %v402 = vadd.f32 %v325, %v401
      %v403 = vpop.f32.mrb[0].mxu0
      %404 = vmatprep.mubr.bf16.mxu0 0
      %405 = vmatmul.mubr.bf16.gmra.mrb[0].mxu0 %v362
      %v406 = vpop.f32.mrb[0].mxu0
      %v407 = vadd.f32 %v330, %v406
      %v408 = vpop.f32.mrb[0].mxu0
      %v409 = vpop.f32.mrb[0].mxu0
      %v410 = vadd.f32 %v333, %v409
      %v411 = vpop.f32.mrb[0].mxu0
      %412 = vdwg.mxu0
      %vm413 = vcmask 64512
      %414 = vst.msk [vmem:[%s184] sm:$0xff] %vm413, %v399
      %415 = vst.msk [vmem:[%s184 + $0x8] sm:$0xff] %vm413, %v402
      %416 = vst.msk [vmem:[%s184 + $0x10] sm:$0xff] %vm413, %v407
      %417 = vst.msk [vmem:[%s184 + $0x18] sm:$0xff] %vm413, %v410
      %s418 = smul.u32 4, %s18
      %p419 = scmp.lt.s32.totalorder %s17, 1
      %s420 = scalar_select %p419, %s17, 1
      %p421 = scmp.lt.s32.totalorder %s418, 7
      %s422 = scalar_select %p421, %s418, 7
      %s423 = smul.addr %s420, 8
      %s424 = sadd.s32 %s422, %s423
      %s425 = smul.addr %s424, 8
      %s426 = scalar_lea.vmem %s2, %s425
      // Predicated region
      $region29: #{cnn_block_forward.1} parent=27 // pred_check
        %p427 = pneg %p94
      $region30: #{cnn_block_forward.1} parent=27 // pred_check_branch
        %429 = sbr.rel (%p427) target = $region32
      $region31: #{cnn_block_forward.1} parent=27 // pred_region
        %s430 = smul.u32 4, %s18
      $region32: #{cnn_block_forward.1} parent=27 // pred_fallthru
        _
    $region28: #{cnn_block_forward.1} parent=5 // pred_fallthru
      _
    %p431 = scmp.le.s32.totalorder 2, %s8
    // Predicated region
    $region33: #{cnn_block_forward.1} parent=5 // pred_check
      %p432 = pneg %p431
    $region34: #{cnn_block_forward.1} parent=5 // pred_check_branch
      %434 = sbr.rel (%p432) target = $region36
    $region35: #{cnn_block_forward.1} parent=5 // pred_region
      %s435 = ssub.s32 %s8, 2
      // Predicated region
      $region37: #{cnn_block_forward.1} parent=35 // pred_check
        %p436 = pneg %p100
      $region38: #{cnn_block_forward.1} parent=35 // pred_check_branch
        %438 = sbr.rel (%p436) target = $region40
      $region39: #{cnn_block_forward.1} parent=35 // pred_region
        %s439 = smul.u32 4, %s20
        %p440 = scmp.lt.s32.totalorder %s19, 1
        %s441 = scalar_select %p440, %s19, 1
        %p442 = scmp.lt.s32.totalorder %s439, 7
        %s443 = scalar_select %p442, %s439, 7
        %s444 = smul.addr %s441, 8
        %s445 = sadd.s32 %s443, %s444
        %s446 = smul.addr %s445, 8
        %s447 = scalar_lea.vmem %s2, %s446
      $region40: #{cnn_block_forward.1} parent=35 // pred_fallthru
        _
    $region36: #{cnn_block_forward.1} parent=5 // pred_fallthru
      _
  $region6: #{cnn_block_forward.1} parent=0 // loop_footer
    %s12 = sadd.s32 1, %s8
  $region7: #{cnn_block_forward.1} parent=0 // loop_footer_branch
    %7 = sbr.rel target = $region3
  $region8: #{cnn_block_forward.1} parent=0 // loop_exit
    _

</llo_original>
